<compile_context>
chip_gen: v7x
topology: tpu7x:2x2x1
jax: 0.10.0
libtpu: 0.0.40
codegen_flags: <defaults>
</compile_context>

<pallas_src>
import functools

import jax
import jax.numpy as jnp
from jax.experimental import pallas as pl
from jax.experimental.pallas import tpu as pltpu

LAYER_NUM = 2
EPS_BN = 1e-5
EPS_L2_SQ = 1e-12 ** 2  # torch F.normalize clamps the NORM at 1e-12


# ---------------------------------------------------------------------------
# Single fused kernel: 2x (SAGE conv -> GraphNorm -> [ReLU] -> [+res] -> L2)
#                      -> one-hot link gather -> predictor MLP -> sigmoid
# Everything in transposed [feature, node] layout, node dim padded to 128.
# ---------------------------------------------------------------------------
def _gnn_fused_kernel(featT_ref, aT_ref, w_ref, vec_ref, sel_ref, o_ref,
                      *, n_nodes, hidden):
    f32, bf16 = jnp.float32, jnp.bfloat16
    H = hidden
    Np = aT_ref.shape[0]
    inv_n = 1.0 / float(n_nodes)

    aT = aT_ref[...]                       # [Np, Np] bf16  (= A_mean^T, zero-padded)
    vec = vec_ref[...]                     # [H, 9]   f32   packed small vectors

    # validity mask over the (padded) node/lane axis
    lane = jax.lax.broadcasted_iota(jnp.int32, (1, Np), 1)
    mask = (lane < n_nodes).astype(f32)    # [1, Np]

    def col(j):                            # one packed column -> [H, 1]
        return vec[:, j:j + 1]

    def sage(xT_bf, w_self, w_neigh, b):
        # xT_bf: [Fin, Np] bf16.  h^T = Wself^T x^T + Wneigh^T (x^T A^T) + b
        aggT = jnp.dot(xT_bf, aT, preferred_element_type=f32).astype(bf16)   # [Fin, Np]
        hT = (jnp.dot(w_self, xT_bf, preferred_element_type=f32)
              + jnp.dot(w_neigh, aggT, preferred_element_type=f32))          # [H, Np]
        return hT + b

    def graphnorm(hT, g, be):
        # per-feature stats over the TRUE node count (masked lane reduce)
        hm = hT * mask
        mean = jnp.sum(hm, axis=1, keepdims=True) * inv_n                    # [H, 1]
        diff = (hT - mean) * mask
        var = jnp.sum(diff * diff, axis=1, keepdims=True) * inv_n            # [H, 1]
        scale = g * jax.lax.rsqrt(var + EPS_BN)
        return diff * scale + be * mask     # padded node columns stay zero

    def l2norm(yT):
        # per-node L2 normalize (feature axis = sublanes)
        ss = jnp.sum(yT * yT, axis=0, keepdims=True)                         # [1, Np]
        return yT * jax.lax.rsqrt(jnp.maximum(ss, EPS_L2_SQ))

    # ---- layer 0: conv -> GraphNorm -> ReLU -> L2 ------------------------
    xT0 = featT_ref[...].astype(bf16)                                        # [F, Np]
    h = sage(xT0, w_ref[0:H, :], w_ref[H:2 * H, :], col(0))
    h = graphnorm(h, col(1), col(2))
    h = jnp.maximum(h, 0.0)
    h = l2norm(h)
    x_last = h

    # ---- layer 1: conv -> GraphNorm -> +residual -> L2 -------------------
    h2 = sage(h.astype(bf16), w_ref[2 * H:3 * H, :], w_ref[3 * H:4 * H, :], col(3))
    h2 = graphnorm(h2, col(4), col(5))
    h2 = h2 + x_last
    xT_l = l2norm(h2)                                                        # [H, Np] f32

    # ---- link predictor (symmetric: x_r == x_l) --------------------------
    # gather BOTH endpoints with one wide one-hot matmul, then lane-slice
    x_bf = xT_l.astype(bf16)
    gath = jnp.dot(x_bf, sel_ref[...], preferred_element_type=f32)           # [H, 2*Lp]
    Lp = sel_ref.shape[1] // 2
    xiT = gath[:, :Lp]
    xjT = gath[:, Lp:]
    prodT = (xiT * xjT).astype(bf16)                                         # [H, Lp]
    h1T = jnp.dot(w_ref[4 * H:5 * H, :], prodT, preferred_element_type=f32)  # [Hh, Lp]
    h1T = jnp.maximum(h1T + col(6), 0.0)
    logits = jnp.sum(h1T * col(7), axis=0, keepdims=True) + vec[0:1, 8:9]    # [1, Lp]
    o_ref[...] = jax.nn.sigmoid(logits).astype(o_ref.dtype)


# ---------------------------------------------------------------------------
# Wrapper: layout plumbing (pad node dim to 128, pack weights / vectors /
# one-hot selectors into 5 arrays, lane-dense [1, Lp] output)
# ---------------------------------------------------------------------------
def gnn_forward(feat, a_norm, links, params):
    N, F = feat.shape
    H = params["layers"][0]["w_self"].shape[1]
    assert F == H, "packed-weight layout assumes num_features == hidden_dim (config: 32/32)"
    L = links.shape[1]
    Np = max(128, ((N + 127) // 128) * 128)   # lane-dense padded node count
    Lp = max(128, ((L + 127) // 128) * 128)   # lane-dense padded link count

    bf16, f32 = jnp.bfloat16, jnp.float32

    featT = jnp.zeros((F, Np), f32).at[:, :N].set(feat.T.astype(f32))          # [F, Np]
    aT = jnp.zeros((Np, Np), bf16).at[:N, :N].set(a_norm.T.astype(bf16))       # [Np, Np]

    l1, l2, pp = params["layers"][0], params["layers"][1], params["pred"]

    # one sublane-packed weight slab: [self1 | neigh1 | self2 | neigh2 | pred_w1^T]
    w_all = jnp.concatenate(
        [l1["w_self"].T, l1["w_neigh"].T,
         l2["w_self"].T, l2["w_neigh"].T,
         pp["w1"].T],
        axis=0).astype(bf16)                                                   # [5H, F]

    def colv(v):
        return v.reshape(-1, 1).astype(f32)

    pb2col = jnp.zeros((H, 1), f32).at[0, 0].set(pp["b2"].reshape(()))
    vec_all = jnp.concatenate(
        [colv(l1["b"]), colv(l1["gamma"]), colv(l1["beta"]),
         colv(l2["b"]), colv(l2["gamma"]), colv(l2["beta"]),
         colv(pp["b1"]), colv(pp["w2"]), pb2col],
        axis=1)                                                                # [H, 9]

    ids = jnp.arange(Np, dtype=jnp.int32)

    def selector(idx):
        idx_p = jnp.full((Lp,), -1, jnp.int32).at[:L].set(idx.astype(jnp.int32))
        return (ids[:, None] == idx_p[None, :]).astype(bf16)                   # [Np, Lp]

    sel_both = jnp.concatenate([selector(links[0]), selector(links[1])], axis=1)  # [Np, 2Lp]

    kernel = functools.partial(_gnn_fused_kernel, n_nodes=N, hidden=H)
    args = (featT, aT, w_all, vec_all, sel_both)

    out_row = pl.pallas_call(
        kernel,
        out_shape=jax.ShapeDtypeStruct((1, Lp), f32),
        grid=(1,),
        in_specs=[pl.BlockSpec(a.shape, lambda i: (0, 0)) for a in args],
        out_specs=pl.BlockSpec((1, Lp), lambda i: (0, 0)),
        compiler_params=pltpu.CompilerParams(dimension_semantics=("arbitrary",)),
    )(*args)

    return out_row[0, :L].reshape(L, 1)


# ---------------------------------------------------------------------------
# Pure-JAX f32 reference (same math, node-major layout) for validation
# ---------------------------------------------------------------------------
def _gnn_reference(feat, a_norm, links, params):
    x, x_last = feat, None
    for i in range(LAYER_NUM):
        lp = params["layers"][i]
        agg = a_norm @ x
        h = x @ lp["w_self"] + agg @ lp["w_neigh"] + lp["b"]
        mean = h.mean(axis=0, keepdims=True)
        var = ((h - mean) ** 2).mean(axis=0, keepdims=True)
        y = lp["gamma"] * (h - mean) / jnp.sqrt(var + EPS_BN) + lp["beta"]
        if i < LAYER_NUM - 1:
            y = jnp.maximum(y, 0.0)
        if x_last is not None:
            y = y + x_last
        nrm = jnp.sqrt((y * y).sum(axis=-1, keepdims=True))
        y = y / jnp.maximum(nrm, 1e-12)
        x, x_last = y, y
    xi, xj = x[links[0]], x[links[1]]
    pp = params["pred"]
    h = jnp.maximum((xi * xj) @ pp["w1"] + pp["b1"], 0.0)
    return jax.nn.sigmoid(h @ pp["w2"] + pp["b2"])


def init_params(key, f_in, hidden):
    ks = jax.random.split(key, 12)
    layers = []
    dims = [f_in] + [hidden] * (LAYER_NUM - 1)
    for i in range(LAYER_NUM):
        din = dims[i]
        layers.append(
            dict(
                w_self=jax.random.normal(ks[4 * i + 0], (din, hidden), jnp.float32) * 0.1,
                w_neigh=jax.random.normal(ks[4 * i + 1], (din, hidden), jnp.float32) * 0.1,
                b=jnp.zeros((1, hidden), jnp.float32),
                gamma=jnp.ones((1, hidden), jnp.float32),
                beta=jnp.zeros((1, hidden), jnp.float32),
            )
        )
    pred = dict(
        w1=jax.random.normal(ks[8], (hidden, hidden), jnp.float32) * 0.1,
        b1=jnp.zeros((1, hidden), jnp.float32),
        w2=jax.random.normal(ks[9], (hidden, 1), jnp.float32) * 0.1,
        b2=jnp.zeros((1, 1), jnp.float32),
    )
    return dict(layers=layers, pred=pred)


if __name__ == "__main__":
    N_NODES = 64
    NUM_FEATURES = 32
    HIDDEN = 32
    NUM_LINKS = 16

    key = jax.random.PRNGKey(0)
    k_feat, k_adj, k_links, k_par = jax.random.split(key, 4)

    # node features [N, F]
    feat = jax.random.normal(k_feat, (N_NODES, NUM_FEATURES), jnp.float32)

    # random graph -> dense row-normalized (mean) adjacency with self loops
    adj = (jax.random.uniform(k_adj, (N_NODES, N_NODES)) < 0.1).astype(jnp.float32)
    adj = jnp.minimum(adj + jnp.eye(N_NODES, dtype=jnp.float32), 1.0)
    a_norm = adj / jnp.maximum(jnp.sum(adj, axis=1, keepdims=True), 1.0)

    # links: [2, num_links] node-index pairs
    links = jax.random.randint(k_links, (2, NUM_LINKS), 0, N_NODES, dtype=jnp.int32)

    params = init_params(k_par, NUM_FEATURES, HIDDEN)

    out = gnn_forward(feat, a_norm, links, params)
    out = jax.block_until_ready(out)

    assert out.shape == (NUM_LINKS, 1)
    assert bool(jnp.all(jnp.isfinite(out)))

    ref = _gnn_reference(feat, a_norm, links, params)
    err = float(jnp.max(jnp.abs(out - ref)))
    assert err < 5e-2, f"max abs error vs f32 reference too large: {err}"

    print("KERNEL_OK")
</pallas_src>

<mosaic_0001>
module attributes {stable_mosaic.version = 11 : i64} {
  func.func @_gnn_fused_kernel(%arg0: i32, %arg1: memref<32x128xf32, #tpu.memory_space<vmem>>, %arg2: memref<128x128xbf16, #tpu.memory_space<vmem>>, %arg3: memref<160x32xbf16, #tpu.memory_space<vmem>>, %arg4: memref<32x9xf32, #tpu.memory_space<vmem>>, %arg5: memref<128x256xbf16, #tpu.memory_space<vmem>>, %arg6: memref<1x128xf32, #tpu.memory_space<vmem>>) attributes {dimension_semantics = [#tpu.dimension_semantics<arbitrary>], iteration_bounds = array<i64: 1>, scalar_prefetch = 0 : i64, scratch_operands = 0 : i64, tpu.core_type = #tpu.core_type<tc>, window_params = [{pipeline_mode = #tpu.pipeline_mode<synchronous>, transform_indices = @transform_0, window_bounds = array<i64: 32, 128>}, {pipeline_mode = #tpu.pipeline_mode<synchronous>, transform_indices = @transform_1, window_bounds = array<i64: 128, 128>}, {pipeline_mode = #tpu.pipeline_mode<synchronous>, transform_indices = @transform_2, window_bounds = array<i64: 160, 32>}, {pipeline_mode = #tpu.pipeline_mode<synchronous>, transform_indices = @transform_3, window_bounds = array<i64: 32, 9>}, {pipeline_mode = #tpu.pipeline_mode<synchronous>, transform_indices = @transform_4, window_bounds = array<i64: 128, 256>}, {pipeline_mode = #tpu.pipeline_mode<synchronous>, transform_indices = @transform_5, window_bounds = array<i64: 1, 128>}]} {
    %c0 = arith.constant 0 : index
    %c0_0 = arith.constant 0 : index
    %0 = vector.load %arg2[%c0, %c0_0] : memref<128x128xbf16, #tpu.memory_space<vmem>>, vector<128x128xbf16>
    %c0_1 = arith.constant 0 : index
    %c0_2 = arith.constant 0 : index
    %1 = vector.load %arg4[%c0_1, %c0_2] : memref<32x9xf32, #tpu.memory_space<vmem>>, vector<32x9xf32>
    %2 = tpu.iota {dimensions = array<i32: 1>} : vector<1x128xi32>
    %c64_i32 = arith.constant 64 : i32
    %3 = vector.broadcast %c64_i32 : i32 to vector<1x128xi32>
    %4 = arith.cmpi slt, %2, %3 : vector<1x128xi32>
    %5 = arith.extui %4 : vector<1x128xi1> to vector<1x128xi32>
    %6 = arith.sitofp %5 : vector<1x128xi32> to vector<1x128xf32>
    %c0_3 = arith.constant 0 : index
    %c0_4 = arith.constant 0 : index
    %7 = vector.load %arg1[%c0_3, %c0_4] : memref<32x128xf32, #tpu.memory_space<vmem>>, vector<32x128xf32>
    %8 = arith.truncf %7 : vector<32x128xf32> to vector<32x128xbf16>
    %c0_5 = arith.constant 0 : index
    %c0_6 = arith.constant 0 : index
    %9 = vector.load %arg3[%c0_5, %c0_6] : memref<160x32xbf16, #tpu.memory_space<vmem>>, vector<32x32xbf16>
    %c32 = arith.constant 32 : index
    %c0_7 = arith.constant 0 : index
    %10 = vector.load %arg3[%c32, %c0_7] : memref<160x32xbf16, #tpu.memory_space<vmem>>, vector<32x32xbf16>
    %11 = vector.extract_strided_slice %1 {offsets = [0, 0], sizes = [32, 1], strides = [1, 1]} : vector<32x9xf32> to vector<32x1xf32>
    %cst = arith.constant dense<0.000000e+00> : vector<32x128xf32>
    %12 = tpu.matmul %8, %0, %cst {dimension_numbers = #tpu.dot_dimension_numbers<[1], [0], [0], [1], [0, 0, 1, 1], [], []>} : vector<32x128xbf16>, vector<128x128xbf16>, vector<32x128xf32> -> vector<32x128xf32>
    %13 = arith.truncf %12 : vector<32x128xf32> to vector<32x128xbf16>
    %cst_8 = arith.constant dense<0.000000e+00> : vector<32x128xf32>
    %14 = tpu.matmul %9, %8, %cst_8 {dimension_numbers = #tpu.dot_dimension_numbers<[1], [0], [0], [1], [0, 0, 1, 1], [], []>} : vector<32x32xbf16>, vector<32x128xbf16>, vector<32x128xf32> -> vector<32x128xf32>
    %cst_9 = arith.constant dense<0.000000e+00> : vector<32x128xf32>
    %15 = tpu.matmul %10, %13, %cst_9 {dimension_numbers = #tpu.dot_dimension_numbers<[1], [0], [0], [1], [0, 0, 1, 1], [], []>} : vector<32x32xbf16>, vector<32x128xbf16>, vector<32x128xf32> -> vector<32x128xf32>
    %16 = arith.addf %14, %15 : vector<32x128xf32>
    %17 = vector.broadcast %11 : vector<32x1xf32> to vector<32x128xf32>
    %18 = arith.addf %16, %17 : vector<32x128xf32>
    %19 = vector.extract_strided_slice %1 {offsets = [0, 1], sizes = [32, 1], strides = [1, 1]} : vector<32x9xf32> to vector<32x1xf32>
    %20 = vector.extract_strided_slice %1 {offsets = [0, 2], sizes = [32, 1], strides = [1, 1]} : vector<32x9xf32> to vector<32x1xf32>
    %21 = vector.broadcast %6 : vector<1x128xf32> to vector<32x128xf32>
    %22 = arith.mulf %18, %21 : vector<32x128xf32>
    %cst_10 = arith.constant dense<0.000000e+00> : vector<32xf32>
    %23 = vector.multi_reduction <add>, %22, %cst_10 [1] : vector<32x128xf32> to vector<32xf32>
    %24 = vector.shape_cast %23 : vector<32xf32> to vector<32x1xf32>
    %cst_11 = arith.constant 1.562500e-02 : f32
    %25 = vector.broadcast %cst_11 : f32 to vector<32x1xf32>
    %26 = arith.mulf %24, %25 : vector<32x1xf32>
    %27 = vector.broadcast %26 : vector<32x1xf32> to vector<32x128xf32>
    %28 = arith.subf %18, %27 : vector<32x128xf32>
    %29 = vector.broadcast %6 : vector<1x128xf32> to vector<32x128xf32>
    %30 = arith.mulf %28, %29 : vector<32x128xf32>
    %31 = arith.mulf %30, %30 : vector<32x128xf32>
    %cst_12 = arith.constant dense<0.000000e+00> : vector<32xf32>
    %32 = vector.multi_reduction <add>, %31, %cst_12 [1] : vector<32x128xf32> to vector<32xf32>
    %33 = vector.shape_cast %32 : vector<32xf32> to vector<32x1xf32>
    %cst_13 = arith.constant 1.562500e-02 : f32
    %34 = vector.broadcast %cst_13 : f32 to vector<32x1xf32>
    %35 = arith.mulf %33, %34 : vector<32x1xf32>
    %cst_14 = arith.constant 9.99999974E-6 : f32
    %36 = vector.broadcast %cst_14 : f32 to vector<32x1xf32>
    %37 = arith.addf %35, %36 : vector<32x1xf32>
    %38 = math.rsqrt %37 : vector<32x1xf32>
    %39 = arith.mulf %19, %38 : vector<32x1xf32>
    %40 = vector.broadcast %39 : vector<32x1xf32> to vector<32x128xf32>
    %41 = arith.mulf %30, %40 : vector<32x128xf32>
    %42 = vector.broadcast %20 : vector<32x1xf32> to vector<32x128xf32>
    %43 = vector.broadcast %6 : vector<1x128xf32> to vector<32x128xf32>
    %44 = arith.mulf %42, %43 : vector<32x128xf32>
    %45 = arith.addf %41, %44 : vector<32x128xf32>
    %cst_15 = arith.constant 0.000000e+00 : f32
    %46 = vector.broadcast %cst_15 : f32 to vector<32x128xf32>
    %47 = arith.maximumf %45, %46 : vector<32x128xf32>
    %48 = arith.mulf %47, %47 : vector<32x128xf32>
    %cst_16 = arith.constant dense<0.000000e+00> : vector<128xf32>
    %49 = vector.multi_reduction <add>, %48, %cst_16 [0] : vector<32x128xf32> to vector<128xf32>
    %50 = vector.shape_cast %49 : vector<128xf32> to vector<1x128xf32>
    %cst_17 = arith.constant 1.000000e-24 : f32
    %51 = vector.broadcast %cst_17 : f32 to vector<1x128xf32>
    %52 = arith.maximumf %50, %51 : vector<1x128xf32>
    %53 = math.rsqrt %52 : vector<1x128xf32>
    %54 = vector.broadcast %53 : vector<1x128xf32> to vector<32x128xf32>
    %55 = arith.mulf %47, %54 : vector<32x128xf32>
    %56 = arith.truncf %55 : vector<32x128xf32> to vector<32x128xbf16>
    %c64 = arith.constant 64 : index
    %c0_18 = arith.constant 0 : index
    %57 = vector.load %arg3[%c64, %c0_18] : memref<160x32xbf16, #tpu.memory_space<vmem>>, vector<32x32xbf16>
    %c96 = arith.constant 96 : index
    %c0_19 = arith.constant 0 : index
    %58 = vector.load %arg3[%c96, %c0_19] : memref<160x32xbf16, #tpu.memory_space<vmem>>, vector<32x32xbf16>
    %59 = vector.extract_strided_slice %1 {offsets = [0, 3], sizes = [32, 1], strides = [1, 1]} : vector<32x9xf32> to vector<32x1xf32>
    %cst_20 = arith.constant dense<0.000000e+00> : vector<32x128xf32>
    %60 = tpu.matmul %56, %0, %cst_20 {dimension_numbers = #tpu.dot_dimension_numbers<[1], [0], [0], [1], [0, 0, 1, 1], [], []>} : vector<32x128xbf16>, vector<128x128xbf16>, vector<32x128xf32> -> vector<32x128xf32>
    %61 = arith.truncf %60 : vector<32x128xf32> to vector<32x128xbf16>
    %cst_21 = arith.constant dense<0.000000e+00> : vector<32x128xf32>
    %62 = tpu.matmul %57, %56, %cst_21 {dimension_numbers = #tpu.dot_dimension_numbers<[1], [0], [0], [1], [0, 0, 1, 1], [], []>} : vector<32x32xbf16>, vector<32x128xbf16>, vector<32x128xf32> -> vector<32x128xf32>
    %cst_22 = arith.constant dense<0.000000e+00> : vector<32x128xf32>
    %63 = tpu.matmul %58, %61, %cst_22 {dimension_numbers = #tpu.dot_dimension_numbers<[1], [0], [0], [1], [0, 0, 1, 1], [], []>} : vector<32x32xbf16>, vector<32x128xbf16>, vector<32x128xf32> -> vector<32x128xf32>
    %64 = arith.addf %62, %63 : vector<32x128xf32>
    %65 = vector.broadcast %59 : vector<32x1xf32> to vector<32x128xf32>
    %66 = arith.addf %64, %65 : vector<32x128xf32>
    %67 = vector.extract_strided_slice %1 {offsets = [0, 4], sizes = [32, 1], strides = [1, 1]} : vector<32x9xf32> to vector<32x1xf32>
    %68 = vector.extract_strided_slice %1 {offsets = [0, 5], sizes = [32, 1], strides = [1, 1]} : vector<32x9xf32> to vector<32x1xf32>
    %69 = vector.broadcast %6 : vector<1x128xf32> to vector<32x128xf32>
    %70 = arith.mulf %66, %69 : vector<32x128xf32>
    %cst_23 = arith.constant dense<0.000000e+00> : vector<32xf32>
    %71 = vector.multi_reduction <add>, %70, %cst_23 [1] : vector<32x128xf32> to vector<32xf32>
    %72 = vector.shape_cast %71 : vector<32xf32> to vector<32x1xf32>
    %cst_24 = arith.constant 1.562500e-02 : f32
    %73 = vector.broadcast %cst_24 : f32 to vector<32x1xf32>
    %74 = arith.mulf %72, %73 : vector<32x1xf32>
    %75 = vector.broadcast %74 : vector<32x1xf32> to vector<32x128xf32>
    %76 = arith.subf %66, %75 : vector<32x128xf32>
    %77 = vector.broadcast %6 : vector<1x128xf32> to vector<32x128xf32>
    %78 = arith.mulf %76, %77 : vector<32x128xf32>
    %79 = arith.mulf %78, %78 : vector<32x128xf32>
    %cst_25 = arith.constant dense<0.000000e+00> : vector<32xf32>
    %80 = vector.multi_reduction <add>, %79, %cst_25 [1] : vector<32x128xf32> to vector<32xf32>
    %81 = vector.shape_cast %80 : vector<32xf32> to vector<32x1xf32>
    %cst_26 = arith.constant 1.562500e-02 : f32
    %82 = vector.broadcast %cst_26 : f32 to vector<32x1xf32>
    %83 = arith.mulf %81, %82 : vector<32x1xf32>
    %cst_27 = arith.constant 9.99999974E-6 : f32
    %84 = vector.broadcast %cst_27 : f32 to vector<32x1xf32>
    %85 = arith.addf %83, %84 : vector<32x1xf32>
    %86 = math.rsqrt %85 : vector<32x1xf32>
    %87 = arith.mulf %67, %86 : vector<32x1xf32>
    %88 = vector.broadcast %87 : vector<32x1xf32> to vector<32x128xf32>
    %89 = arith.mulf %78, %88 : vector<32x128xf32>
    %90 = vector.broadcast %68 : vector<32x1xf32> to vector<32x128xf32>
    %91 = vector.broadcast %6 : vector<1x128xf32> to vector<32x128xf32>
    %92 = arith.mulf %90, %91 : vector<32x128xf32>
    %93 = arith.addf %89, %92 : vector<32x128xf32>
    %94 = arith.addf %93, %55 : vector<32x128xf32>
    %95 = arith.mulf %94, %94 : vector<32x128xf32>
    %cst_28 = arith.constant dense<0.000000e+00> : vector<128xf32>
    %96 = vector.multi_reduction <add>, %95, %cst_28 [0] : vector<32x128xf32> to vector<128xf32>
    %97 = vector.shape_cast %96 : vector<128xf32> to vector<1x128xf32>
    %cst_29 = arith.constant 1.000000e-24 : f32
    %98 = vector.broadcast %cst_29 : f32 to vector<1x128xf32>
    %99 = arith.maximumf %97, %98 : vector<1x128xf32>
    %100 = math.rsqrt %99 : vector<1x128xf32>
    %101 = vector.broadcast %100 : vector<1x128xf32> to vector<32x128xf32>
    %102 = arith.mulf %94, %101 : vector<32x128xf32>
    %103 = arith.truncf %102 : vector<32x128xf32> to vector<32x128xbf16>
    %c0_30 = arith.constant 0 : index
    %c0_31 = arith.constant 0 : index
    %104 = vector.load %arg5[%c0_30, %c0_31] : memref<128x256xbf16, #tpu.memory_space<vmem>>, vector<128x256xbf16>
    %cst_32 = arith.constant dense<0.000000e+00> : vector<32x256xf32>
    %105 = tpu.matmul %103, %104, %cst_32 {dimension_numbers = #tpu.dot_dimension_numbers<[1], [0], [0], [1], [0, 0, 1, 1], [], []>} : vector<32x128xbf16>, vector<128x256xbf16>, vector<32x256xf32> -> vector<32x256xf32>
    %106 = vector.extract_strided_slice %105 {offsets = [0, 0], sizes = [32, 128], strides = [1, 1]} : vector<32x256xf32> to vector<32x128xf32>
    %107 = vector.extract_strided_slice %105 {offsets = [0, 128], sizes = [32, 128], strides = [1, 1]} : vector<32x256xf32> to vector<32x128xf32>
    %108 = arith.mulf %106, %107 : vector<32x128xf32>
    %109 = arith.truncf %108 : vector<32x128xf32> to vector<32x128xbf16>
    %c128 = arith.constant 128 : index
    %c0_33 = arith.constant 0 : index
    %110 = vector.load %arg3[%c128, %c0_33] : memref<160x32xbf16, #tpu.memory_space<vmem>>, vector<32x32xbf16>
    %cst_34 = arith.constant dense<0.000000e+00> : vector<32x128xf32>
    %111 = tpu.matmul %110, %109, %cst_34 {dimension_numbers = #tpu.dot_dimension_numbers<[1], [0], [0], [1], [0, 0, 1, 1], [], []>} : vector<32x32xbf16>, vector<32x128xbf16>, vector<32x128xf32> -> vector<32x128xf32>
    %112 = vector.extract_strided_slice %1 {offsets = [0, 6], sizes = [32, 1], strides = [1, 1]} : vector<32x9xf32> to vector<32x1xf32>
    %113 = vector.broadcast %112 : vector<32x1xf32> to vector<32x128xf32>
    %114 = arith.addf %111, %113 : vector<32x128xf32>
    %cst_35 = arith.constant 0.000000e+00 : f32
    %115 = vector.broadcast %cst_35 : f32 to vector<32x128xf32>
    %116 = arith.maximumf %114, %115 : vector<32x128xf32>
    %117 = vector.extract_strided_slice %1 {offsets = [0, 7], sizes = [32, 1], strides = [1, 1]} : vector<32x9xf32> to vector<32x1xf32>
    %118 = vector.broadcast %117 : vector<32x1xf32> to vector<32x128xf32>
    %119 = arith.mulf %116, %118 : vector<32x128xf32>
    %cst_36 = arith.constant dense<0.000000e+00> : vector<128xf32>
    %120 = vector.multi_reduction <add>, %119, %cst_36 [0] : vector<32x128xf32> to vector<128xf32>
    %121 = vector.shape_cast %120 : vector<128xf32> to vector<1x128xf32>
    %122 = vector.extract_strided_slice %1 {offsets = [0, 8], sizes = [1, 1], strides = [1, 1]} : vector<32x9xf32> to vector<1x1xf32>
    %123 = vector.broadcast %122 : vector<1x1xf32> to vector<1x128xf32>
    %124 = arith.addf %121, %123 : vector<1x128xf32>
    %125 = arith.negf %124 : vector<1x128xf32>
    %126 = math.exp %125 : vector<1x128xf32>
    %cst_37 = arith.constant 1.000000e+00 : f32
    %127 = vector.broadcast %cst_37 : f32 to vector<1x128xf32>
    %128 = arith.addf %127, %126 : vector<1x128xf32>
    %129 = arith.divf %127, %128 : vector<1x128xf32>
    %c0_38 = arith.constant 0 : index
    %c0_39 = arith.constant 0 : index
    %130 = vector.load %arg6[%c0_38, %c0_39] : memref<1x128xf32, #tpu.memory_space<vmem>>, vector<1x128xf32>
    tpu.vector_store %arg6[%c0_38, %c0_39], %129 {strides = array<i32>} : memref<1x128xf32, #tpu.memory_space<vmem>>, vector<1x128xf32>,
    return
  }
  func.func @transform_0(%arg0: i32) -> (i32, i32) {
    %c0_i32 = arith.constant 0 : i32
    %c0_i32_0 = arith.constant 0 : i32
    %c0_i32_1 = arith.constant 0 : i32
    return %c0_i32, %c0_i32_0 : i32, i32
  }
  func.func @transform_1(%arg0: i32) -> (i32, i32) {
    %c0_i32 = arith.constant 0 : i32
    %c0_i32_0 = arith.constant 0 : i32
    %c0_i32_1 = arith.constant 0 : i32
    return %c0_i32, %c0_i32_0 : i32, i32
  }
  func.func @transform_2(%arg0: i32) -> (i32, i32) {
    %c0_i32 = arith.constant 0 : i32
    %c0_i32_0 = arith.constant 0 : i32
    %c0_i32_1 = arith.constant 0 : i32
    return %c0_i32, %c0_i32_0 : i32, i32
  }
  func.func @transform_3(%arg0: i32) -> (i32, i32) {
    %c0_i32 = arith.constant 0 : i32
    %c0_i32_0 = arith.constant 0 : i32
    %c0_i32_1 = arith.constant 0 : i32
    return %c0_i32, %c0_i32_0 : i32, i32
  }
  func.func @transform_4(%arg0: i32) -> (i32, i32) {
    %c0_i32 = arith.constant 0 : i32
    %c0_i32_0 = arith.constant 0 : i32
    %c0_i32_1 = arith.constant 0 : i32
    return %c0_i32, %c0_i32_0 : i32, i32
  }
  func.func @transform_5(%arg0: i32) -> (i32, i32) {
    %c0_i32 = arith.constant 0 : i32
    %c0_i32_0 = arith.constant 0 : i32
    %c0_i32_1 = arith.constant 0 : i32
    return %c0_i32, %c0_i32_0 : i32, i32
  }
}

</mosaic_0001>

<llo_original>
// kernel: tpu_custom_call.1
$region0: #{tpu_custom_call.1}
  #allocation0 [shape = 'u32[]', space=smem, size = 0x4, offset = 0x4, fixed_abs, tag = 'smem constant byte address 0x4 - core index']
  #allocation1 [shape = 'u32[144,128]{1,0:T(1,128)}', space=vmem, size = 0x12000, scoped, tag = 'internal scratch']
  %s0 = inlined_call_operand.vmem [shape: f32[32,128], index: 0, kind: input, shape index: {}]
  %s1 = inlined_call_operand.hbm [shape: bf16[128,128], index: 1, kind: input, shape index: {}]
  %s2 = inlined_call_operand.vmem [shape: bf16[160,32], index: 2, kind: input, shape index: {}]
  %s3 = inlined_call_operand.vmem [shape: f32[32,9], index: 3, kind: input, shape index: {}]
  %s4 = inlined_call_operand.vmem [shape: bf16[128,256], index: 4, kind: input, shape index: {}]
  %s5 = inlined_call_operand.hbm [shape: f32[1,128], index: 5, kind: output, shape index: {}]
  %s6 = sld [smem:[#allocation0]]
  $region34: #{tpu_custom_call.1} parent=0
    _
  %s8 = ssub.s32 1, %s6
  %s9 = scalar_select 0, %s8, %s6
  $region1: #{tpu_custom_call.1} parent=0
    #allocation2 [shape = 'u8[32768]{0}', space=vmem, size = 0x8000, scoped, tag = 'input window, operand 1, single buffered']
    #allocation3 [shape = 's32[1]{0}', space=sflag, size = 0x4, scoped, tag = 'scoped memory for tpu_custom_call.1']
    #allocation4 [shape = 's32[1]{0}', space=sflag, size = 0x4, scoped, tag = 'scoped memory for tpu_custom_call.1']
    #allocation5 [shape = 'u8[512]{0}', space=vmem, size = 0x400, scoped, tag = 'output window, operand 0, single buffered']
    %10 = vsyncpa [#allocation3], 0
    %11 = vsyncpa [#allocation4], 0
    // Predicated region
    $region2: #{tpu_custom_call.1} parent=1 // pred_check
      _
    $region3: #{tpu_custom_call.1} parent=1 // pred_check_branch
      %13 = sbr.rel (0) target = $region5
    $region4: #{tpu_custom_call.1} parent=1 // pred_region
      _
    $region5: #{tpu_custom_call.1} parent=1 // pred_fallthru
      _
    // Predicated region
    $region6: #{tpu_custom_call.1} parent=1 // pred_check
      _
    $region7: #{tpu_custom_call.1} parent=1 // pred_check_branch
      %15 = sbr.rel (0) target = $region9
    $region8: #{tpu_custom_call.1} parent=1 // pred_region
      %s17 = ssub.s32 1024, 1024
      %18 = vsyncadd [#allocation3], %s17
      %s19 = sshll.u32 [#allocation2], 4
      %s20 = int_to_ptr.vmem [resolvable:$true] %s19
      %25 = dma.hbm_to_vmem [thread:$0]  %s1, 1024, %s20, [#allocation3], 64, 64, 4
    $region9: #{tpu_custom_call.1} parent=1 // pred_fallthru
      _
    // Predicated region
    $region10: #{tpu_custom_call.1} parent=1 // pred_check
      _
    $region11: #{tpu_custom_call.1} parent=1 // pred_check_branch
      %27 = sbr.rel (0) target = $region13
    $region12: #{tpu_custom_call.1} parent=1 // pred_region
      _
    $region13: #{tpu_custom_call.1} parent=1 // pred_fallthru
      _
    // Predicated region
    $region14: #{tpu_custom_call.1} parent=1 // pred_check
      _
    $region15: #{tpu_custom_call.1} parent=1 // pred_check_branch
      %29 = sbr.rel (0) target = $region17
    $region16: #{tpu_custom_call.1} parent=1 // pred_region
      _
    $region17: #{tpu_custom_call.1} parent=1 // pred_fallthru
      _
    // Predicated region
    $region18: #{tpu_custom_call.1} parent=1 // pred_check
      _
    $region19: #{tpu_custom_call.1} parent=1 // pred_check_branch
      %31 = sbr.rel (0) target = $region21
    $region20: #{tpu_custom_call.1} parent=1 // pred_region
      _
    $region21: #{tpu_custom_call.1} parent=1 // pred_fallthru
      _
    // Predicated region
    $region22: #{tpu_custom_call.1} parent=1 // pred_check
      _
    $region23: #{tpu_custom_call.1} parent=1 // pred_check_branch
      %33 = sbr.rel (0) target = $region25
    $region24: #{tpu_custom_call.1} parent=1 // pred_region
      %34 = dma.done [#allocation3], 1024
    $region25: #{tpu_custom_call.1} parent=1 // pred_fallthru
      _
    %v36 = vld [vmem:[#allocation2] sm:$0xf]
    %v37 = vld [vmem:[#allocation2 + $0x4] sm:$0xf]
    %v38 = vld [vmem:[#allocation2 + $0x8] sm:$0xf]
    %v39 = vld [vmem:[#allocation2 + $0xc] sm:$0xf]
    %v40 = vld [vmem:[#allocation2 + $0x10] sm:$0xf]
    %v41 = vld [vmem:[#allocation2 + $0x14] sm:$0xf]
    %v42 = vld [vmem:[#allocation2 + $0x18] sm:$0xf]
    %v43 = vld [vmem:[#allocation2 + $0x1c] sm:$0xf]
    %v44 = vld [vmem:[#allocation2 + $0x20] sm:$0xf]
    %v45 = vld [vmem:[#allocation2 + $0x24] sm:$0xf]
    %v46 = vld [vmem:[#allocation2 + $0x28] sm:$0xf]
    %v47 = vld [vmem:[#allocation2 + $0x2c] sm:$0xf]
    %v48 = vld [vmem:[#allocation2 + $0x30] sm:$0xf]
    %v49 = vld [vmem:[#allocation2 + $0x34] sm:$0xf]
    %v50 = vld [vmem:[#allocation2 + $0x38] sm:$0xf]
    %v51 = vld [vmem:[#allocation2 + $0x3c] sm:$0xf]
    %v52 = vld [vmem:[%s3] sm:$0xff]
    %v53 = vld [vmem:[%s3 + $0x8] sm:$0xff]
    %v54 = vld [vmem:[%s3 + $0x10] sm:$0xff]
    %v55 = vld [vmem:[%s3 + $0x18] sm:$0xff]
    %v56 = vlaneseq
    %v57 = vand.u32 %v56, 127
    %vm58 = vcmp.lt.s32.totalorder %v57, 64
    %v59 = vsel %vm58, 1, 0
    %v60 = vcvt.s32.f32 %v59
    %v61 = vld [vmem:[%s0] sm:$0xff]
    %v62 = vld [vmem:[%s0 + $0x8] sm:$0xff]
    %v63 = vld [vmem:[%s0 + $0x10] sm:$0xff]
    %v64 = vld [vmem:[%s0 + $0x18] sm:$0xff]
    %v65 = vpack.c.bf16 %v62, %v61
    %v66 = vpack.c.bf16 %v64, %v63
    %v67 = vld [vmem:[%s2] sm:$0xf]
    %v68 = vld [vmem:[%s2 + $0x4] sm:$0xf]
    %v69 = vld [vmem:[%s2 + $0x8] sm:$0xf]
    %v70 = vld [vmem:[%s2 + $0xc] sm:$0xf]
    %v71 = vld [vmem:[%s2 + $0x10] sm:$0xf]
    %v72 = vld [vmem:[%s2 + $0x14] sm:$0xf]
    %v73 = vld [vmem:[%s2 + $0x18] sm:$0xf]
    %v74 = vld [vmem:[%s2 + $0x1c] sm:$0xf]
    %v91 = vunpack.c.l.b16 %v36
    %v92 = vunpack.c.l.b16 %v37
    %v93 = vunpack.c.l.b16 %v38
    %v94 = vunpack.c.l.b16 %v39
    %v95 = vunpack.c.l.b16 %v40
    %v96 = vunpack.c.l.b16 %v41
    %v97 = vunpack.c.l.b16 %v42
    %v98 = vunpack.c.l.b16 %v43
    %v99 = vunpack.c.l.b16 %v44
    %v100 = vunpack.c.l.b16 %v45
    %v101 = vunpack.c.l.b16 %v46
    %v102 = vunpack.c.l.b16 %v47
    %v103 = vunpack.c.l.b16 %v48
    %v104 = vunpack.c.l.b16 %v49
    %v105 = vunpack.c.l.b16 %v50
    %v106 = vunpack.c.l.b16 %v51
    %v107 = vpack.c.b16 %v92, %v91
    %v108 = vpack.c.b16 %v94, %v93
    %v109 = vpack.c.b16 %v96, %v95
    %v110 = vpack.c.b16 %v98, %v97
    %v111 = vpack.c.b16 %v100, %v99
    %v112 = vpack.c.b16 %v102, %v101
    %v113 = vpack.c.b16 %v104, %v103
    %v114 = vpack.c.b16 %v106, %v105
    %123 = vmatprep.subr.bf16.mxu0 0
    %124 = vmatpush1.bf16.msra.mxu0 %v107
    %125 = vmatprep.subr.bf16.mxu0 0
    %126 = vmatpush1.bf16.msra.mxu0 %v108
    %127 = vmatprep.subr.bf16.mxu0 0
    %128 = vmatpush1.bf16.msra.mxu0 %v109
    %129 = vmatprep.subr.bf16.mxu0 0
    %130 = vmatpush1.bf16.msra.mxu0 %v110
    %131 = vmatprep.subr.bf16.mxu0 0
    %132 = vmatpush1.bf16.msra.mxu0 %v111
    %133 = vmatprep.subr.bf16.mxu0 0
    %134 = vmatpush1.bf16.msra.mxu0 %v112
    %135 = vmatprep.subr.bf16.mxu0 0
    %136 = vmatpush1.bf16.msra.mxu0 %v113
    %137 = vmatprep.subr.bf16.mxu0 0
    %138 = vmatpush1.bf16.msra.mxu0 %v114
    %139 = vmatprep.subr.bf16.mxu0 0
    %140 = vmatpush1.bf16.msra.mxu0 0
    %141 = vmatprep.subr.bf16.mxu0 0
    %142 = vmatpush1.bf16.msra.mxu0 0
    %143 = vmatprep.subr.bf16.mxu0 0
    %144 = vmatpush1.bf16.msra.mxu0 0
    %145 = vmatprep.subr.bf16.mxu0 0
    %146 = vmatpush1.bf16.msra.mxu0 0
    %147 = vmatprep.subr.bf16.mxu0 0
    %148 = vmatpush1.bf16.msra.mxu0 0
    %149 = vmatprep.subr.bf16.mxu0 0
    %150 = vmatpush1.bf16.msra.mxu0 0
    %151 = vmatprep.subr.bf16.mxu0 0
    %152 = vmatpush1.bf16.msra.mxu0 0
    %153 = vmatprep.subr.bf16.mxu0 0
    %154 = vmatpush1.bf16.msra.mxu0 0
    %155 = vmatprep.mubr.bf16.mxu0 0
    %156 = vmatmul.mubr.bf16.gmra.mrb[0].mxu0 %v65
    %v157 = vpop.f32.mrb[0].mxu0
    %v158 = vadd.f32 0.0, %v157
    %v159 = vpop.f32.mrb[0].mxu0
    %v160 = vpop.f32.mrb[0].mxu0
    %v161 = vadd.f32 0.0, %v160
    %v162 = vpop.f32.mrb[0].mxu0
    %163 = vmatprep.mubr.bf16.mxu0 0
    %164 = vmatmul.mubr.bf16.gmra.mrb[0].mxu0 %v66
    %v165 = vpop.f32.mrb[0].mxu0
    %v166 = vadd.f32 0.0, %v165
    %v167 = vpop.f32.mrb[0].mxu0
    %v168 = vpop.f32.mrb[0].mxu0
    %v169 = vadd.f32 0.0, %v168
    %v170 = vpop.f32.mrb[0].mxu0
    %171 = vdwg.mxu0
    %v172 = vpack.c.bf16 %v161, %v158
    %v173 = vpack.c.bf16 %v169, %v166
    %v178 = vunpack.c.l.b16 %v71
    %v179 = vunpack.c.l.b16 %v72
    %v180 = vunpack.c.l.b16 %v73
    %v181 = vunpack.c.l.b16 %v74
    %v182 = vpack.c.b16 %v179, %v178
    %v183 = vpack.c.b16 %v181, %v180
    %vm184 = vcmask 261120
    %v186 = vsel %vm184, %v182, 0
    %v189 = vsel %vm184, %v183, 0
    %191 = vmatprep.subr.bf16.mxu0 0
    %192 = vmatpush1.bf16.msra.mxu0 %v172
    %193 = vmatprep.subr.bf16.mxu0 0
    %194 = vmatpush1.bf16.msra.mxu0 %v173
    %195 = vmatprep.subr.bf16.mxu0 0
    %196 = vmatpush1.bf16.msra.mxu0 0
    %197 = vmatprep.subr.bf16.mxu0 0
    %198 = vmatpush1.bf16.msra.mxu0 0
    %199 = vmatprep.subr.bf16.mxu0 0
    %200 = vmatpush1.bf16.msra.mxu0 0
    %201 = vmatprep.subr.bf16.mxu0 0
    %202 = vmatpush1.bf16.msra.mxu0 0
    %203 = vmatprep.subr.bf16.mxu0 0
    %204 = vmatpush1.bf16.msra.mxu0 0
    %205 = vmatprep.subr.bf16.mxu0 0
    %206 = vmatpush1.bf16.msra.mxu0 0
    %207 = vmatprep.subr.bf16.mxu0 0
    %208 = vmatpush1.bf16.msra.mxu0 0
    %209 = vmatprep.subr.bf16.mxu0 0
    %210 = vmatpush1.bf16.msra.mxu0 0
    %211 = vmatprep.subr.bf16.mxu0 0
    %212 = vmatpush1.bf16.msra.mxu0 0
    %213 = vmatprep.subr.bf16.mxu0 0
    %214 = vmatpush1.bf16.msra.mxu0 0
    %215 = vmatprep.subr.bf16.mxu0 0
    %216 = vmatpush1.bf16.msra.mxu0 0
    %217 = vmatprep.subr.bf16.mxu0 0
    %218 = vmatpush1.bf16.msra.mxu0 0
    %219 = vmatprep.subr.bf16.mxu0 0
    %220 = vmatpush1.bf16.msra.mxu0 0
    %221 = vmatprep.subr.bf16.mxu0 0
    %222 = vmatpush1.bf16.msra.mxu0 0
    %223 = vmatprep.mubr.bf16.mxu0 0
    %224 = vmatmul.mubr.bf16.gmra.mrb[0].mxu0 %v186
    %v225 = vpop.f32.mrb[0].mxu0
    %v226 = vadd.f32 0.0, %v225
    %v227 = vpop.f32.mrb[0].mxu0
    %v228 = vpop.f32.mrb[0].mxu0
    %v229 = vadd.f32 0.0, %v228
    %v230 = vpop.f32.mrb[0].mxu0
    %231 = vmatprep.mubr.bf16.mxu0 0
    %232 = vmatmul.mubr.bf16.gmra.mrb[0].mxu0 %v189
    %v233 = vpop.f32.mrb[0].mxu0
    %v234 = vadd.f32 0.0, %v233
    %v235 = vpop.f32.mrb[0].mxu0
    %v236 = vpop.f32.mrb[0].mxu0
    %v237 = vadd.f32 0.0, %v236
    %v238 = vpop.f32.mrb[0].mxu0
    %239 = vdwg.mxu0
    %v244 = vunpack.c.l.b16 %v67
    %v245 = vunpack.c.l.b16 %v68
    %v246 = vunpack.c.l.b16 %v69
    %v247 = vunpack.c.l.b16 %v70
    %v248 = vpack.c.b16 %v245, %v244
    %v249 = vpack.c.b16 %v247, %v246
    %v251 = vsel %vm184, %v248, 0
    %v254 = vsel %vm184, %v249, 0
    %256 = vmatprep.subr.bf16.mxu0 0
    %257 = vmatpush1.bf16.msra.mxu0 %v65
    %258 = vmatprep.subr.bf16.mxu0 0
    %259 = vmatpush1.bf16.msra.mxu0 %v66
    %260 = vmatprep.subr.bf16.mxu0 0
    %261 = vmatpush1.bf16.msra.mxu0 0
    %262 = vmatprep.subr.bf16.mxu0 0
    %263 = vmatpush1.bf16.msra.mxu0 0
    %264 = vmatprep.subr.bf16.mxu0 0
    %265 = vmatpush1.bf16.msra.mxu0 0
    %266 = vmatprep.subr.bf16.mxu0 0
    %267 = vmatpush1.bf16.msra.mxu0 0
    %268 = vmatprep.subr.bf16.mxu0 0
    %269 = vmatpush1.bf16.msra.mxu0 0
    %270 = vmatprep.subr.bf16.mxu0 0
    %271 = vmatpush1.bf16.msra.mxu0 0
    %272 = vmatprep.subr.bf16.mxu0 0
    %273 = vmatpush1.bf16.msra.mxu0 0
    %274 = vmatprep.subr.bf16.mxu0 0
    %275 = vmatpush1.bf16.msra.mxu0 0
    %276 = vmatprep.subr.bf16.mxu0 0
    %277 = vmatpush1.bf16.msra.mxu0 0
    %278 = vmatprep.subr.bf16.mxu0 0
    %279 = vmatpush1.bf16.msra.mxu0 0
    %280 = vmatprep.subr.bf16.mxu0 0
    %281 = vmatpush1.bf16.msra.mxu0 0
    %282 = vmatprep.subr.bf16.mxu0 0
    %283 = vmatpush1.bf16.msra.mxu0 0
    %284 = vmatprep.subr.bf16.mxu0 0
    %285 = vmatpush1.bf16.msra.mxu0 0
    %286 = vmatprep.subr.bf16.mxu0 0
    %287 = vmatpush1.bf16.msra.mxu0 0
    %288 = vmatprep.mubr.bf16.mxu0 0
    %289 = vmatmul.mubr.bf16.gmra.mrb[0].mxu0 %v251
    %v290 = vpop.f32.mrb[0].mxu0
    %v291 = vadd.f32 %v226, %v290
    %v292 = vpop.f32.mrb[0].mxu0
    %v293 = vpop.f32.mrb[0].mxu0
    %v294 = vadd.f32 %v229, %v293
    %v295 = vpop.f32.mrb[0].mxu0
    %296 = vmatprep.mubr.bf16.mxu0 0
    %297 = vmatmul.mubr.bf16.gmra.mrb[0].mxu0 %v254
    %v298 = vpop.f32.mrb[0].mxu0
    %v299 = vadd.f32 %v234, %v298
    %v300 = vpop.f32.mrb[0].mxu0
    %v301 = vpop.f32.mrb[0].mxu0
    %v302 = vadd.f32 %v237, %v301
    %v303 = vpop.f32.mrb[0].mxu0
    %304 = vdwg.mxu0
    %306 = vset.pattern.permute.xlu0 0
    %307 = vperm.xlu0 %306, %v52
    %v308 = vpop.permute.xlu0 %307
    %311 = vset.pattern.permute.xlu0 0
    %312 = vperm.xlu0 %311, %v53
    %v313 = vpop.permute.xlu0 %312
    %316 = vset.pattern.permute.xlu0 0
    %317 = vperm.xlu0 %316, %v54
    %v318 = vpop.permute.xlu0 %317
    %321 = vset.pattern.permute.xlu0 0
    %322 = vperm.xlu0 %321, %v55
    %v323 = vpop.permute.xlu0 %322
    %v325 = vadd.f32 %v291, %v308
    %v326 = vadd.f32 %v294, %v313
    %v327 = vadd.f32 %v299, %v318
    %v328 = vadd.f32 %v302, %v323
    %v329 = vmul.f32 %v325, %v60
    %v330 = vmul.f32 %v326, %v60
    %v331 = vmul.f32 %v327, %v60
    %v332 = vmul.f32 %v328, %v60
    %333 = vadd.xlane.f32.xlu0 %v329
    %v334 = vpop.xlane.xlu0 %333
    %335 = vadd.xlane.f32.xlu0 %v330
    %v336 = vpop.xlane.xlu0 %335
    %337 = vadd.xlane.f32.xlu0 %v331
    %v338 = vpop.xlane.xlu0 %337
    %339 = vadd.xlane.f32.xlu0 %v332
    %v340 = vpop.xlane.xlu0 %339
    %v341 = vmul.f32 %v334, 0.015625
    %v342 = vmul.f32 %v336, 0.015625
    %v343 = vmul.f32 %v338, 0.015625
    %v344 = vmul.f32 %v340, 0.015625
    %v345 = vsub.f32 %v325, %v341
    %v346 = vsub.f32 %v326, %v342
    %v347 = vsub.f32 %v327, %v343
    %v348 = vsub.f32 %v328, %v344
    %v349 = vmul.f32 %v345, %v60
    %v350 = vmul.f32 %v346, %v60
    %v351 = vmul.f32 %v347, %v60
    %v352 = vmul.f32 %v348, %v60
    %v353 = vmul.f32 %v349, %v349
    %v354 = vmul.f32 %v350, %v350
    %v355 = vmul.f32 %v351, %v351
    %v356 = vmul.f32 %v352, %v352
    %357 = vadd.xlane.f32.xlu0 %v353
    %v358 = vpop.xlane.xlu0 %357
    %359 = vadd.xlane.f32.xlu0 %v354
    %v360 = vpop.xlane.xlu0 %359
    %361 = vadd.xlane.f32.xlu0 %v355
    %v362 = vpop.xlane.xlu0 %361
    %363 = vadd.xlane.f32.xlu0 %v356
    %v364 = vpop.xlane.xlu0 %363
    %v365 = vmul.f32 %v358, 0.015625
    %v366 = vmul.f32 %v360, 0.015625
    %v367 = vmul.f32 %v362, 0.015625
    %v368 = vmul.f32 %v364, 0.015625
    %v369 = vadd.f32 %v365, 1e-05
    %v370 = vadd.f32 %v366, 1e-05
    %v371 = vadd.f32 %v367, 1e-05
    %v372 = vadd.f32 %v368, 1e-05
    %v373 = vrsqrt.pop %v369
    %v374 = vrsqrt.pop %v370
    %v375 = vrsqrt.pop %v371
    %v376 = vrsqrt.pop %v372
    %v377 = vmul.f32 %v52, %v373
    %v378 = vmul.f32 %v53, %v374
    %v379 = vmul.f32 %v54, %v375
    %v380 = vmul.f32 %v55, %v376
    %382 = vset.pattern.permute.xlu0 1
    %383 = vperm.xlu0 %382, %v377
    %v384 = vpop.permute.xlu0 %383
    %387 = vset.pattern.permute.xlu0 1
    %388 = vperm.xlu0 %387, %v378
    %v389 = vpop.permute.xlu0 %388
    %392 = vset.pattern.permute.xlu0 1
    %393 = vperm.xlu0 %392, %v379
    %v394 = vpop.permute.xlu0 %393
    %397 = vset.pattern.permute.xlu0 1
    %398 = vperm.xlu0 %397, %v380
    %v399 = vpop.permute.xlu0 %398
    %v401 = vmul.f32 %v349, %v384
    %v402 = vmul.f32 %v350, %v389
    %v403 = vmul.f32 %v351, %v394
    %v404 = vmul.f32 %v352, %v399
    %405 = vset.pattern.permute.xlu0 2
    %406 = vperm.xlu0 %405, %v52
    %v407 = vpop.permute.xlu0 %406
    %409 = vset.pattern.permute.xlu0 2
    %410 = vperm.xlu0 %409, %v53
    %v411 = vpop.permute.xlu0 %410
    %413 = vset.pattern.permute.xlu0 2
    %414 = vperm.xlu0 %413, %v54
    %v415 = vpop.permute.xlu0 %414
    %417 = vset.pattern.permute.xlu0 2
    %418 = vperm.xlu0 %417, %v55
    %v419 = vpop.permute.xlu0 %418
    %v421 = vmul.f32 %v407, %v60
    %v422 = vmul.f32 %v411, %v60
    %v423 = vmul.f32 %v415, %v60
    %v424 = vmul.f32 %v419, %v60
    %v425 = vadd.f32 %v401, %v421
    %v426 = vadd.f32 %v402, %v422
    %v427 = vadd.f32 %v403, %v423
    %v428 = vadd.f32 %v404, %v424
    %v429 = vmax.f32 %v425, 0.0
    %v430 = vmax.f32 %v426, 0.0
    %v431 = vmax.f32 %v427, 0.0
    %v432 = vmax.f32 %v428, 0.0
    %v433 = vmul.f32 %v429, %v429
    %v434 = vmul.f32 %v430, %v430
    %v435 = vmul.f32 %v431, %v431
    %v436 = vmul.f32 %v432, %v432
    %v437 = vadd.f32 %v433, %v434
    %v438 = vadd.f32 %v437, %v435
    %v439 = vadd.f32 %v438, %v436
    %v440 = vrot.slane %v439, 4
    %v441 = vadd.f32 %v439, %v440
    %v442 = vrot.slane %v441, 2
    %v443 = vadd.f32 %v441, %v442
    %v444 = vrot.slane %v443, 1
    %v445 = vadd.f32 %v443, %v444
    %v446 = vmax.f32 %v445, 1e-24
    %v447 = vrsqrt.pop %v446
    %v448 = vmul.f32 %v429, %v447
    %v449 = vmul.f32 %v430, %v447
    %v450 = vmul.f32 %v431, %v447
    %v451 = vmul.f32 %v432, %v447
    %v452 = vpack.c.bf16 %v449, %v448
    %v453 = vpack.c.bf16 %v451, %v450
    %v454 = vld [vmem:[%s2 + $0x20] sm:$0xf]
    %v455 = vld [vmem:[%s2 + $0x24] sm:$0xf]
    %v456 = vld [vmem:[%s2 + $0x28] sm:$0xf]
    %v457 = vld [vmem:[%s2 + $0x2c] sm:$0xf]
    %v458 = vld [vmem:[%s2 + $0x30] sm:$0xf]
    %v459 = vld [vmem:[%s2 + $0x34] sm:$0xf]
    %v460 = vld [vmem:[%s2 + $0x38] sm:$0xf]
    %v461 = vld [vmem:[%s2 + $0x3c] sm:$0xf]
    %462 = vmatprep.subr.bf16.mxu0 0
    %463 = vmatpush1.bf16.msra.mxu0 %v107
    %464 = vmatprep.subr.bf16.mxu0 0
    %465 = vmatpush1.bf16.msra.mxu0 %v108
    %466 = vmatprep.subr.bf16.mxu0 0
    %467 = vmatpush1.bf16.msra.mxu0 %v109
    %468 = vmatprep.subr.bf16.mxu0 0
    %469 = vmatpush1.bf16.msra.mxu0 %v110
    %470 = vmatprep.subr.bf16.mxu0 0
    %471 = vmatpush1.bf16.msra.mxu0 %v111
    %472 = vmatprep.subr.bf16.mxu0 0
    %473 = vmatpush1.bf16.msra.mxu0 %v112
    %474 = vmatprep.subr.bf16.mxu0 0
    %475 = vmatpush1.bf16.msra.mxu0 %v113
    %476 = vmatprep.subr.bf16.mxu0 0
    %477 = vmatpush1.bf16.msra.mxu0 %v114
    %478 = vmatprep.subr.bf16.mxu0 0
    %479 = vmatpush1.bf16.msra.mxu0 0
    %480 = vmatprep.subr.bf16.mxu0 0
    %481 = vmatpush1.bf16.msra.mxu0 0
    %482 = vmatprep.subr.bf16.mxu0 0
    %483 = vmatpush1.bf16.msra.mxu0 0
    %484 = vmatprep.subr.bf16.mxu0 0
    %485 = vmatpush1.bf16.msra.mxu0 0
    %486 = vmatprep.subr.bf16.mxu0 0
    %487 = vmatpush1.bf16.msra.mxu0 0
    %488 = vmatprep.subr.bf16.mxu0 0
    %489 = vmatpush1.bf16.msra.mxu0 0
    %490 = vmatprep.subr.bf16.mxu0 0
    %491 = vmatpush1.bf16.msra.mxu0 0
    %492 = vmatprep.subr.bf16.mxu0 0
    %493 = vmatpush1.bf16.msra.mxu0 0
    %494 = vmatprep.mubr.bf16.mxu0 0
    %495 = vmatmul.mubr.bf16.gmra.mrb[0].mxu0 %v452
    %v496 = vpop.f32.mrb[0].mxu0
    %v497 = vadd.f32 0.0, %v496
    %v498 = vpop.f32.mrb[0].mxu0
    %v499 = vpop.f32.mrb[0].mxu0
    %v500 = vadd.f32 0.0, %v499
    %v501 = vpop.f32.mrb[0].mxu0
    %502 = vmatprep.mubr.bf16.mxu0 0
    %503 = vmatmul.mubr.bf16.gmra.mrb[0].mxu0 %v453
    %v504 = vpop.f32.mrb[0].mxu0
    %v505 = vadd.f32 0.0, %v504
    %v506 = vpop.f32.mrb[0].mxu0
    %v507 = vpop.f32.mrb[0].mxu0
    %v508 = vadd.f32 0.0, %v507
    %v509 = vpop.f32.mrb[0].mxu0
    %510 = vdwg.mxu0
    %v511 = vpack.c.bf16 %v500, %v497
    %v512 = vpack.c.bf16 %v508, %v505
    %v517 = vunpack.c.l.b16 %v458
    %v518 = vunpack.c.l.b16 %v459
    %v519 = vunpack.c.l.b16 %v460
    %v520 = vunpack.c.l.b16 %v461
    %v521 = vpack.c.b16 %v518, %v517
    %v522 = vpack.c.b16 %v520, %v519
    %v524 = vsel %vm184, %v521, 0
    %v527 = vsel %vm184, %v522, 0
    %529 = vmatprep.subr.bf16.mxu0 0
    %530 = vmatpush1.bf16.msra.mxu0 %v511
    %531 = vmatprep.subr.bf16.mxu0 0
    %532 = vmatpush1.bf16.msra.mxu0 %v512
    %533 = vmatprep.subr.bf16.mxu0 0
    %534 = vmatpush1.bf16.msra.mxu0 0
    %535 = vmatprep.subr.bf16.mxu0 0
    %536 = vmatpush1.bf16.msra.mxu0 0
    %537 = vmatprep.subr.bf16.mxu0 0
    %538 = vmatpush1.bf16.msra.mxu0 0
    %539 = vmatprep.subr.bf16.mxu0 0
    %540 = vmatpush1.bf16.msra.mxu0 0
    %541 = vmatprep.subr.bf16.mxu0 0
    %542 = vmatpush1.bf16.msra.mxu0 0
    %543 = vmatprep.subr.bf16.mxu0 0
    %544 = vmatpush1.bf16.msra.mxu0 0
    %545 = vmatprep.subr.bf16.mxu0 0
    %546 = vmatpush1.bf16.msra.mxu0 0
    %547 = vmatprep.subr.bf16.mxu0 0
    %548 = vmatpush1.bf16.msra.mxu0 0
    %549 = vmatprep.subr.bf16.mxu0 0
    %550 = vmatpush1.bf16.msra.mxu0 0
    %551 = vmatprep.subr.bf16.mxu0 0
    %552 = vmatpush1.bf16.msra.mxu0 0
    %553 = vmatprep.subr.bf16.mxu0 0
    %554 = vmatpush1.bf16.msra.mxu0 0
    %555 = vmatprep.subr.bf16.mxu0 0
    %556 = vmatpush1.bf16.msra.mxu0 0
    %557 = vmatprep.subr.bf16.mxu0 0
    %558 = vmatpush1.bf16.msra.mxu0 0
    %559 = vmatprep.subr.bf16.mxu0 0
    %560 = vmatpush1.bf16.msra.mxu0 0
    %561 = vmatprep.mubr.bf16.mxu0 0
    %562 = vmatmul.mubr.bf16.gmra.mrb[0].mxu0 %v524
    %v563 = vpop.f32.mrb[0].mxu0
    %v564 = vadd.f32 0.0, %v563
    %v565 = vpop.f32.mrb[0].mxu0
    %v566 = vpop.f32.mrb[0].mxu0
    %v567 = vadd.f32 0.0, %v566
    %v568 = vpop.f32.mrb[0].mxu0
    %569 = vmatprep.mubr.bf16.mxu0 0
    %570 = vmatmul.mubr.bf16.gmra.mrb[0].mxu0 %v527
    %v571 = vpop.f32.mrb[0].mxu0
    %v572 = vadd.f32 0.0, %v571
    %v573 = vpop.f32.mrb[0].mxu0
    %v574 = vpop.f32.mrb[0].mxu0
    %v575 = vadd.f32 0.0, %v574
    %v576 = vpop.f32.mrb[0].mxu0
    %577 = vdwg.mxu0
    %v582 = vunpack.c.l.b16 %v454
    %v583 = vunpack.c.l.b16 %v455
    %v584 = vunpack.c.l.b16 %v456
    %v585 = vunpack.c.l.b16 %v457
    %v586 = vpack.c.b16 %v583, %v582
    %v587 = vpack.c.b16 %v585, %v584
    %v589 = vsel %vm184, %v586, 0
    %v592 = vsel %vm184, %v587, 0
    %594 = vmatprep.subr.bf16.mxu0 0
    %595 = vmatpush1.bf16.msra.mxu0 %v452
    %596 = vmatprep.subr.bf16.mxu0 0
    %597 = vmatpush1.bf16.msra.mxu0 %v453
    %598 = vmatprep.subr.bf16.mxu0 0
    %599 = vmatpush1.bf16.msra.mxu0 0
    %600 = vmatprep.subr.bf16.mxu0 0
    %601 = vmatpush1.bf16.msra.mxu0 0
    %602 = vmatprep.subr.bf16.mxu0 0
    %603 = vmatpush1.bf16.msra.mxu0 0
    %604 = vmatprep.subr.bf16.mxu0 0
    %605 = vmatpush1.bf16.msra.mxu0 0
    %606 = vmatprep.subr.bf16.mxu0 0
    %607 = vmatpush1.bf16.msra.mxu0 0
    %608 = vmatprep.subr.bf16.mxu0 0
    %609 = vmatpush1.bf16.msra.mxu0 0
    %610 = vmatprep.subr.bf16.mxu0 0
    %611 = vmatpush1.bf16.msra.mxu0 0
    %612 = vmatprep.subr.bf16.mxu0 0
    %613 = vmatpush1.bf16.msra.mxu0 0
    %614 = vmatprep.subr.bf16.mxu0 0
    %615 = vmatpush1.bf16.msra.mxu0 0
    %616 = vmatprep.subr.bf16.mxu0 0
    %617 = vmatpush1.bf16.msra.mxu0 0
    %618 = vmatprep.subr.bf16.mxu0 0
    %619 = vmatpush1.bf16.msra.mxu0 0
    %620 = vmatprep.subr.bf16.mxu0 0
    %621 = vmatpush1.bf16.msra.mxu0 0
    %622 = vmatprep.subr.bf16.mxu0 0
    %623 = vmatpush1.bf16.msra.mxu0 0
    %624 = vmatprep.subr.bf16.mxu0 0
    %625 = vmatpush1.bf16.msra.mxu0 0
    %626 = vmatprep.mubr.bf16.mxu0 0
    %627 = vmatmul.mubr.bf16.gmra.mrb[0].mxu0 %v589
    %v628 = vpop.f32.mrb[0].mxu0
    %v629 = vadd.f32 %v564, %v628
    %v630 = vpop.f32.mrb[0].mxu0
    %v631 = vpop.f32.mrb[0].mxu0
    %v632 = vadd.f32 %v567, %v631
    %v633 = vpop.f32.mrb[0].mxu0
    %634 = vmatprep.mubr.bf16.mxu0 0
    %635 = vmatmul.mubr.bf16.gmra.mrb[0].mxu0 %v592
    %v636 = vpop.f32.mrb[0].mxu0
    %v637 = vadd.f32 %v572, %v636
    %v638 = vpop.f32.mrb[0].mxu0
    %v639 = vpop.f32.mrb[0].mxu0
    %v640 = vadd.f32 %v575, %v639
    %v641 = vpop.f32.mrb[0].mxu0
    %642 = vdwg.mxu0
    %643 = vset.pattern.permute.xlu0 3
    %644 = vperm.xlu0 %643, %v52
    %v645 = vpop.permute.xlu0 %644
    %647 = vset.pattern.permute.xlu0 3
    %648 = vperm.xlu0 %647, %v53
    %v649 = vpop.permute.xlu0 %648
    %651 = vset.pattern.permute.xlu0 3
    %652 = vperm.xlu0 %651, %v54
    %v653 = vpop.permute.xlu0 %652
    %655 = vset.pattern.permute.xlu0 3
    %656 = vperm.xlu0 %655, %v55
    %v657 = vpop.permute.xlu0 %656
    %v659 = vadd.f32 %v629, %v645
    %v660 = vadd.f32 %v632, %v649
    %v661 = vadd.f32 %v637, %v653
    %v662 = vadd.f32 %v640, %v657
    %v663 = vmul.f32 %v659, %v60
    %v664 = vmul.f32 %v660, %v60
    %v665 = vmul.f32 %v661, %v60
    %v666 = vmul.f32 %v662, %v60
    %667 = vadd.xlane.f32.xlu0 %v663
    %v668 = vpop.xlane.xlu0 %667
    %669 = vadd.xlane.f32.xlu0 %v664
    %v670 = vpop.xlane.xlu0 %669
    %671 = vadd.xlane.f32.xlu0 %v665
    %v672 = vpop.xlane.xlu0 %671
    %673 = vadd.xlane.f32.xlu0 %v666
    %v674 = vpop.xlane.xlu0 %673
    %v675 = vmul.f32 %v668, 0.015625
    %v676 = vmul.f32 %v670, 0.015625
    %v677 = vmul.f32 %v672, 0.015625
    %v678 = vmul.f32 %v674, 0.015625
    %v679 = vsub.f32 %v659, %v675
    %v680 = vsub.f32 %v660, %v676
    %v681 = vsub.f32 %v661, %v677
    %v682 = vsub.f32 %v662, %v678
    %v683 = vmul.f32 %v679, %v60
    %v684 = vmul.f32 %v680, %v60
    %v685 = vmul.f32 %v681, %v60
    %v686 = vmul.f32 %v682, %v60
    %v687 = vmul.f32 %v683, %v683
    %v688 = vmul.f32 %v684, %v684
    %v689 = vmul.f32 %v685, %v685
    %v690 = vmul.f32 %v686, %v686
    %691 = vadd.xlane.f32.xlu0 %v687
    %v692 = vpop.xlane.xlu0 %691
    %693 = vadd.xlane.f32.xlu0 %v688
    %v694 = vpop.xlane.xlu0 %693
    %695 = vadd.xlane.f32.xlu0 %v689
    %v696 = vpop.xlane.xlu0 %695
    %697 = vadd.xlane.f32.xlu0 %v690
    %v698 = vpop.xlane.xlu0 %697
    %v699 = vmul.f32 %v692, 0.015625
    %v700 = vmul.f32 %v694, 0.015625
    %v701 = vmul.f32 %v696, 0.015625
    %v702 = vmul.f32 %v698, 0.015625
    %v703 = vadd.f32 %v699, 1e-05
    %v704 = vadd.f32 %v700, 1e-05
    %v705 = vadd.f32 %v701, 1e-05
    %v706 = vadd.f32 %v702, 1e-05
    %v707 = vrsqrt.pop %v703
    %v708 = vrsqrt.pop %v704
    %v709 = vrsqrt.pop %v705
    %v710 = vrsqrt.pop %v706
    %v711 = vmul.f32 %v52, %v707
    %v712 = vmul.f32 %v53, %v708
    %v713 = vmul.f32 %v54, %v709
    %v714 = vmul.f32 %v55, %v710
    %716 = vset.pattern.permute.xlu0 4
    %717 = vperm.xlu0 %716, %v711
    %v718 = vpop.permute.xlu0 %717
    %721 = vset.pattern.permute.xlu0 4
    %722 = vperm.xlu0 %721, %v712
    %v723 = vpop.permute.xlu0 %722
    %726 = vset.pattern.permute.xlu0 4
    %727 = vperm.xlu0 %726, %v713
    %v728 = vpop.permute.xlu0 %727
    %731 = vset.pattern.permute.xlu0 4
    %732 = vperm.xlu0 %731, %v714
    %v733 = vpop.permute.xlu0 %732
    %v735 = vmul.f32 %v683, %v718
    %v736 = vmul.f32 %v684, %v723
    %v737 = vmul.f32 %v685, %v728
    %v738 = vmul.f32 %v686, %v733
    %739 = vset.pattern.permute.xlu0 5
    %740 = vperm.xlu0 %739, %v52
    %v741 = vpop.permute.xlu0 %740
    %743 = vset.pattern.permute.xlu0 5
    %744 = vperm.xlu0 %743, %v53
    %v745 = vpop.permute.xlu0 %744
    %747 = vset.pattern.permute.xlu0 5
    %748 = vperm.xlu0 %747, %v54
    %v749 = vpop.permute.xlu0 %748
    %751 = vset.pattern.permute.xlu0 5
    %752 = vperm.xlu0 %751, %v55
    %v753 = vpop.permute.xlu0 %752
    %v755 = vmul.f32 %v741, %v60
    %v756 = vmul.f32 %v745, %v60
    %v757 = vmul.f32 %v749, %v60
    %v758 = vmul.f32 %v753, %v60
    %v759 = vadd.f32 %v735, %v755
    %v760 = vadd.f32 %v736, %v756
    %v761 = vadd.f32 %v737, %v757
    %v762 = vadd.f32 %v738, %v758
    %v763 = vadd.f32 %v759, %v448
    %v764 = vadd.f32 %v760, %v449
    %v765 = vadd.f32 %v761, %v450
    %v766 = vadd.f32 %v762, %v451
    %v767 = vmul.f32 %v763, %v763
    %v768 = vmul.f32 %v764, %v764
    %v769 = vmul.f32 %v765, %v765
    %v770 = vmul.f32 %v766, %v766
    %v771 = vadd.f32 %v767, %v768
    %v772 = vadd.f32 %v771, %v769
    %v773 = vadd.f32 %v772, %v770
    %v774 = vrot.slane %v773, 4
    %v775 = vadd.f32 %v773, %v774
    %v776 = vrot.slane %v775, 2
    %v777 = vadd.f32 %v775, %v776
    %v778 = vrot.slane %v777, 1
    %v779 = vadd.f32 %v777, %v778
    %v780 = vmax.f32 %v779, 1e-24
    %v781 = vrsqrt.pop %v780
    %v782 = vmul.f32 %v763, %v781
    %v783 = vmul.f32 %v764, %v781
    %v784 = vmul.f32 %v765, %v781
    %v785 = vmul.f32 %v766, %v781
    %v786 = vpack.c.bf16 %v783, %v782
    %v787 = vpack.c.bf16 %v785, %v784
    %v788 = vld [vmem:[%s4] sm:$0xff]
    %v789 = vld [vmem:[%s4 + $0x8] sm:$0xff]
    %v790 = vld [vmem:[%s4 + $0x10] sm:$0xff]
    %v791 = vld [vmem:[%s4 + $0x18] sm:$0xff]
    %v792 = vld [vmem:[%s4 + $0x20] sm:$0xff]
    %v793 = vld [vmem:[%s4 + $0x28] sm:$0xff]
    %v794 = vld [vmem:[%s4 + $0x30] sm:$0xff]
    %v795 = vld [vmem:[%s4 + $0x38] sm:$0xff]
    %v796 = vld [vmem:[%s4 + $0x40] sm:$0xff]
    %v797 = vld [vmem:[%s4 + $0x48] sm:$0xff]
    %v798 = vld [vmem:[%s4 + $0x50] sm:$0xff]
    %v799 = vld [vmem:[%s4 + $0x58] sm:$0xff]
    %v800 = vld [vmem:[%s4 + $0x60] sm:$0xff]
    %v801 = vld [vmem:[%s4 + $0x68] sm:$0xff]
    %v802 = vld [vmem:[%s4 + $0x70] sm:$0xff]
    %v803 = vld [vmem:[%s4 + $0x78] sm:$0xff]
    %v820 = vunpack.c.l.b16 %v788
    %v821 = vunpack.c.h.b16 %v788
    %v822 = vunpack.c.l.b16 %v789
    %v823 = vunpack.c.h.b16 %v789
    %v824 = vunpack.c.l.b16 %v790
    %v825 = vunpack.c.h.b16 %v790
    %v826 = vunpack.c.l.b16 %v791
    %v827 = vunpack.c.h.b16 %v791
    %v828 = vunpack.c.l.b16 %v792
    %v829 = vunpack.c.h.b16 %v792
    %v830 = vunpack.c.l.b16 %v793
    %v831 = vunpack.c.h.b16 %v793
    %v832 = vunpack.c.l.b16 %v794
    %v833 = vunpack.c.h.b16 %v794
    %v834 = vunpack.c.l.b16 %v795
    %v835 = vunpack.c.h.b16 %v795
    %v836 = vunpack.c.l.b16 %v796
    %v837 = vunpack.c.h.b16 %v796
    %v838 = vunpack.c.l.b16 %v797
    %v839 = vunpack.c.h.b16 %v797
    %v840 = vunpack.c.l.b16 %v798
    %v841 = vunpack.c.h.b16 %v798
    %v842 = vunpack.c.l.b16 %v799
    %v843 = vunpack.c.h.b16 %v799
    %v844 = vunpack.c.l.b16 %v800
    %v845 = vunpack.c.h.b16 %v800
    %v846 = vunpack.c.l.b16 %v801
    %v847 = vunpack.c.h.b16 %v801
    %v848 = vunpack.c.l.b16 %v802
    %v849 = vunpack.c.h.b16 %v802
    %v850 = vunpack.c.l.b16 %v803
    %v851 = vunpack.c.h.b16 %v803
    %v852 = vpack.c.b16 %v822, %v820
    %v853 = vpack.c.b16 %v823, %v821
    %v854 = vpack.c.b16 %v826, %v824
    %v855 = vpack.c.b16 %v827, %v825
    %v856 = vpack.c.b16 %v830, %v828
    %v857 = vpack.c.b16 %v831, %v829
    %v858 = vpack.c.b16 %v834, %v832
    %v859 = vpack.c.b16 %v835, %v833
    %v860 = vpack.c.b16 %v838, %v836
    %v861 = vpack.c.b16 %v839, %v837
    %v862 = vpack.c.b16 %v842, %v840
    %v863 = vpack.c.b16 %v843, %v841
    %v864 = vpack.c.b16 %v846, %v844
    %v865 = vpack.c.b16 %v847, %v845
    %v866 = vpack.c.b16 %v850, %v848
    %v867 = vpack.c.b16 %v851, %v849
    %884 = vmatprep.subr.bf16.mxu0 %v853
    %885 = vmatpush1.bf16.msra.mxu0 %v852
    %886 = vmatprep.subr.bf16.mxu0 %v855
    %887 = vmatpush1.bf16.msra.mxu0 %v854
    %888 = vmatprep.subr.bf16.mxu0 %v857
    %889 = vmatpush1.bf16.msra.mxu0 %v856
    %890 = vmatprep.subr.bf16.mxu0 %v859
    %891 = vmatpush1.bf16.msra.mxu0 %v858
    %892 = vmatprep.subr.bf16.mxu0 %v861
    %893 = vmatpush1.bf16.msra.mxu0 %v860
    %894 = vmatprep.subr.bf16.mxu0 %v863
    %895 = vmatpush1.bf16.msra.mxu0 %v862
    %896 = vmatprep.subr.bf16.mxu0 %v865
    %897 = vmatpush1.bf16.msra.mxu0 %v864
    %898 = vmatprep.subr.bf16.mxu0 %v867
    %899 = vmatpush1.bf16.msra.mxu0 %v866
    %900 = vmatprep.subr.bf16.mxu0 0
    %901 = vmatpush1.bf16.msra.mxu0 0
    %902 = vmatprep.subr.bf16.mxu0 0
    %903 = vmatpush1.bf16.msra.mxu0 0
    %904 = vmatprep.subr.bf16.mxu0 0
    %905 = vmatpush1.bf16.msra.mxu0 0
    %906 = vmatprep.subr.bf16.mxu0 0
    %907 = vmatpush1.bf16.msra.mxu0 0
    %908 = vmatprep.subr.bf16.mxu0 0
    %909 = vmatpush1.bf16.msra.mxu0 0
    %910 = vmatprep.subr.bf16.mxu0 0
    %911 = vmatpush1.bf16.msra.mxu0 0
    %912 = vmatprep.subr.bf16.mxu0 0
    %913 = vmatpush1.bf16.msra.mxu0 0
    %914 = vmatprep.subr.bf16.mxu0 0
    %915 = vmatpush1.bf16.msra.mxu0 0
    %916 = vmatprep.mubr.bf16.mxu0 0
    %917 = vmatmul.mubr.bf16.gmra.mrb[0].mxu0 %v786
    %v918 = vpop.f32.mrb[0].mxu0
    %v919 = vadd.f32 0.0, %v918
    %v920 = vpop.f32.mrb[0].mxu0
    %v921 = vadd.f32 0.0, %v920
    %v922 = vpop.f32.mrb[0].mxu0
    %v923 = vadd.f32 0.0, %v922
    %v924 = vpop.f32.mrb[0].mxu0
    %v925 = vadd.f32 0.0, %v924
    %926 = vmatprep.mubr.bf16.mxu0 0
    %927 = vmatmul.mubr.bf16.gmra.mrb[0].mxu0 %v787
    %v928 = vpop.f32.mrb[0].mxu0
    %v929 = vadd.f32 0.0, %v928
    %v930 = vpop.f32.mrb[0].mxu0
    %v931 = vadd.f32 0.0, %v930
    %v932 = vpop.f32.mrb[0].mxu0
    %v933 = vadd.f32 0.0, %v932
    %v934 = vpop.f32.mrb[0].mxu0
    %v935 = vadd.f32 0.0, %v934
    %936 = vdwg.mxu0
    %v937 = vmul.f32 %v919, %v921
    %v938 = vmul.f32 %v923, %v925
    %v939 = vmul.f32 %v929, %v931
    %v940 = vmul.f32 %v933, %v935
    %v941 = vpack.c.bf16 %v938, %v937
    %v942 = vpack.c.bf16 %v940, %v939
    %v943 = vld [vmem:[%s2 + $0x40] sm:$0xf]
    %v944 = vld [vmem:[%s2 + $0x44] sm:$0xf]
    %v945 = vld [vmem:[%s2 + $0x48] sm:$0xf]
    %v946 = vld [vmem:[%s2 + $0x4c] sm:$0xf]
    %947 = vset.pattern.permute.xlu0 6
    %948 = vperm.xlu0 %947, %v52
    %v949 = vpop.permute.xlu0 %948
    %951 = vset.pattern.permute.xlu0 6
    %952 = vperm.xlu0 %951, %v53
    %v953 = vpop.permute.xlu0 %952
    %955 = vset.pattern.permute.xlu0 6
    %956 = vperm.xlu0 %955, %v54
    %v957 = vpop.permute.xlu0 %956
    %959 = vset.pattern.permute.xlu0 6
    %960 = vperm.xlu0 %959, %v55
    %v961 = vpop.permute.xlu0 %960
    %v967 = vunpack.c.l.b16 %v943
    %v968 = vunpack.c.l.b16 %v944
    %v969 = vunpack.c.l.b16 %v945
    %v970 = vunpack.c.l.b16 %v946
    %v971 = vpack.c.b16 %v968, %v967
    %v972 = vpack.c.b16 %v970, %v969
    %v974 = vsel %vm184, %v971, 0
    %v977 = vsel %vm184, %v972, 0
    %979 = vmatprep.subr.bf16.mxu0 0
    %980 = vmatpush1.bf16.msra.mxu0 %v941
    %981 = vmatprep.subr.bf16.mxu0 0
    %982 = vmatpush1.bf16.msra.mxu0 %v942
    %983 = vmatprep.subr.bf16.mxu0 0
    %984 = vmatpush1.bf16.msra.mxu0 0
    %985 = vmatprep.subr.bf16.mxu0 0
    %986 = vmatpush1.bf16.msra.mxu0 0
    %987 = vmatprep.subr.bf16.mxu0 0
    %988 = vmatpush1.bf16.msra.mxu0 0
    %989 = vmatprep.subr.bf16.mxu0 0
    %990 = vmatpush1.bf16.msra.mxu0 0
    %991 = vmatprep.subr.bf16.mxu0 0
    %992 = vmatpush1.bf16.msra.mxu0 0
    %993 = vmatprep.subr.bf16.mxu0 0
    %994 = vmatpush1.bf16.msra.mxu0 0
    %995 = vmatprep.subr.bf16.mxu0 0
    %996 = vmatpush1.bf16.msra.mxu0 0
    %997 = vmatprep.subr.bf16.mxu0 0
    %998 = vmatpush1.bf16.msra.mxu0 0
    %999 = vmatprep.subr.bf16.mxu0 0
    %1000 = vmatpush1.bf16.msra.mxu0 0
    %1001 = vmatprep.subr.bf16.mxu0 0
    %1002 = vmatpush1.bf16.msra.mxu0 0
    %1003 = vmatprep.subr.bf16.mxu0 0
    %1004 = vmatpush1.bf16.msra.mxu0 0
    %1005 = vmatprep.subr.bf16.mxu0 0
    %1006 = vmatpush1.bf16.msra.mxu0 0
    %1007 = vmatprep.subr.bf16.mxu0 0
    %1008 = vmatpush1.bf16.msra.mxu0 0
    %1009 = vmatprep.subr.bf16.mxu0 0
    %1010 = vmatpush1.bf16.msra.mxu0 0
    %1011 = vmatprep.mubr.bf16.mxu0 0
    %1012 = vmatmul.mubr.bf16.gmra.mrb[0].mxu0 %v974
    %v1013 = vpop.f32.mrb[0].mxu0
    %v1014 = vadd.f32 %v949, %v1013
    %v1015 = vpop.f32.mrb[0].mxu0
    %v1016 = vpop.f32.mrb[0].mxu0
    %v1017 = vadd.f32 %v953, %v1016
    %v1018 = vpop.f32.mrb[0].mxu0
    %1019 = vmatprep.mubr.bf16.mxu0 0
    %1020 = vmatmul.mubr.bf16.gmra.mrb[0].mxu0 %v977
    %v1021 = vpop.f32.mrb[0].mxu0
    %v1022 = vadd.f32 %v957, %v1021
    %v1023 = vpop.f32.mrb[0].mxu0
    %v1024 = vpop.f32.mrb[0].mxu0
    %v1025 = vadd.f32 %v961, %v1024
    %v1026 = vpop.f32.mrb[0].mxu0
    %1027 = vdwg.mxu0
    %v1028 = vmax.f32 %v1014, 0.0
    %v1029 = vmax.f32 %v1017, 0.0
    %v1030 = vmax.f32 %v1022, 0.0
    %v1031 = vmax.f32 %v1025, 0.0
    %1032 = vset.pattern.permute.xlu0 7
    %1033 = vperm.xlu0 %1032, %v52
    %v1034 = vpop.permute.xlu0 %1033
    %1036 = vset.pattern.permute.xlu0 7
    %1037 = vperm.xlu0 %1036, %v53
    %v1038 = vpop.permute.xlu0 %1037
    %1040 = vset.pattern.permute.xlu0 7
    %1041 = vperm.xlu0 %1040, %v54
    %v1042 = vpop.permute.xlu0 %1041
    %1044 = vset.pattern.permute.xlu0 7
    %1045 = vperm.xlu0 %1044, %v55
    %v1046 = vpop.permute.xlu0 %1045
    %v1048 = vmul.f32 %v1028, %v1034
    %v1049 = vmul.f32 %v1029, %v1038
    %v1050 = vmul.f32 %v1030, %v1042
    %v1051 = vmul.f32 %v1031, %v1046
    %v1052 = vadd.f32 %v1048, %v1049
    %v1053 = vadd.f32 %v1052, %v1050
    %v1054 = vadd.f32 %v1053, %v1051
    %v1055 = vrot.slane %v1054, 4
    %v1056 = vadd.f32 %v1054, %v1055
    %v1057 = vrot.slane %v1056, 2
    %v1058 = vadd.f32 %v1056, %v1057
    %v1059 = vrot.slane %v1058, 1
    %v1060 = vadd.f32 %v1058, %v1059
    %1061 = vset.pattern.permute.xlu0 8
    %1062 = vperm.xlu0 %1061, %v52
    %v1063 = vpop.permute.xlu0 %1062
    %v1065 = vadd.f32 %v1060, %v1063
    %v1066 = vxor.u32 %v1065, 2147483648
    %v1067 = vmul.f32 %v1066, 1.442695
    %v1068 = vpow.pop %v1067
    %v1069 = vadd.f32 %v1068, 1.0
    %v1070 = vrcp.pop %v1069
    %v1071 = vmul.f32 1.0, %v1070
    %1072 = vst [vmem:[#allocation5] sm:$0x1] %v1071
    // Predicated region
    $region26: #{tpu_custom_call.1} parent=1 // pred_check
      _
    $region27: #{tpu_custom_call.1} parent=1 // pred_check_branch
      %1074 = sbr.rel (0) target = $region29
    $region28: #{tpu_custom_call.1} parent=1 // pred_region
      %s1076 = ssub.s32 16, 16
      %1077 = vsyncadd [#allocation4], %s1076
      %s1079 = sshll.u32 [#allocation5], 4
      %s1080 = int_to_ptr.vmem [resolvable:$true] %s1079
      %1082 = dma.vmem_to_hbm [thread:$0]  %s1080, 16, %s5, [#allocation4]
    $region29: #{tpu_custom_call.1} parent=1 // pred_fallthru
      _
    // Predicated region
    $region30: #{tpu_custom_call.1} parent=1 // pred_check
      _
    $region31: #{tpu_custom_call.1} parent=1 // pred_check_branch
      %1084 = sbr.rel (0) target = $region33
    $region32: #{tpu_custom_call.1} parent=1 // pred_region
      %1085 = dma.done [#allocation4], 16
    $region33: #{tpu_custom_call.1} parent=1 // pred_fallthru
      _
    %1086 = vsyncpa [#allocation3], 1
    %1087 = vsyncpa [#allocation4], 1

</llo_original>
